<compile_context>
chip_gen: v6e
topology: v6e:2x2x1
jax: 0.10.0
libtpu: 0.0.40
codegen_flags: <defaults>
</compile_context>

<pallas_src>
import math

import jax
import jax.numpy as jnp
from jax.experimental import pallas as pl
from jax.experimental.pallas import tpu as pltpu


def _add_kernel(plane_ref, z_ref, out_ref):
    # plane_ref: (C, HW_TILE)   yx positional plane (channels on sublanes, flat H*W on lanes)
    # z_ref:     (TBT, C, 1)    per-frame, per-channel temporal term
    # out_ref:   (TBT, C, HW_TILE)
    out_ref[...] = (z_ref[...] + plane_ref[...][None, :, :]).astype(out_ref.dtype)


def _sincos_table(vals, dim):
    """vals: (L,) positions; dim: (D,) dim_t divisors -> (L, D) interleaved sin/cos."""
    p = vals[:, None] / dim[None, :]
    odd = ((jnp.arange(dim.shape[0]) % 2) == 1)[None, :]
    # PyTorch interleave: even channel -> sin, odd channel -> cos (dim_t[2i] == dim_t[2i+1]).
    return jnp.where(odd, jnp.cos(p), jnp.sin(p)).astype(jnp.float32)


def _vmem_budget_bytes():
    """Generation-aware VMEM budget (v7x: 64 MiB physical, v5e/v6e: 128 MiB)."""
    cap = None
    try:
        info = pltpu.get_tpu_info()
        for name in ("vmem_capacity_bytes", "vmem_bytes", "vmem_size_bytes"):
            cap = getattr(info, name, None)
            if cap:
                break
    except Exception:
        cap = None
    if not cap:
        cap = 64 << 20              # conservative default: v7x physical VMEM
    return int(cap) * 3 // 4        # leave headroom for Mosaic-internal scratch


def _choose_tiles(BT, C, HW, out_itemsize, vmem_budget, target_block_bytes,
                  min_grid_steps=4):
    """Pick (frames_per_block, hw_tile).

    Priorities:
      * stay within `vmem_budget`, counting double-buffering of every operand;
      * output blocks ~`target_block_bytes` to amortize per-step overhead;
      * hw_tile lane-dense (multiple of 128) so stores are unmasked;
      * prefer growing frames/block over hw_tile (the yx-plane block is reused
        across the inner frame grid axis);
      * leave >= min_grid_steps grid steps so megacore sharding / the pipeline
        has work to overlap (v7x has 2 TensorCores).
    """
    lane = 128
    z_frame_pad = (-(-C // 8)) * 8 * lane * 4      # (C, 1) f32 pads to (8,128) tiles

    # ---- lane (flattened H*W) tile ------------------------------------------
    if HW <= lane:
        hw_tile = HW                               # full dim: legal even if < 128
    else:
        hw_cap = (HW // lane) * lane               # largest dense 128-multiple <= HW
        hw_tile = min(hw_cap,
                      max(lane,
                          (target_block_bytes // (C * out_itemsize)) // lane * lane))
        # budget cap for the single-frame (tbt == 1) path, double-buffered:
        hw_budget = int((vmem_budget // 2 - z_frame_pad) // (C * (out_itemsize + 4)))
        hw_tile = min(hw_tile, max(lane, hw_budget // lane * lane))

    # ---- frames per block ----------------------------------------------------
    frame_bytes = C * hw_tile * out_itemsize
    tbt_budget = int((vmem_budget // 2 - C * hw_tile * 4)
                     // (C * hw_tile * out_itemsize + z_frame_pad))
    tbt = max(1, min(BT, target_block_bytes // max(frame_bytes, 1), tbt_budget))

    # ---- guarantee enough grid steps ------------------------------------------
    def steps(t, h):
        return pl.cdiv(BT, t) * pl.cdiv(HW, h)

    finest = BT * (pl.cdiv(HW, lane) if HW > lane else 1)
    want = min(min_grid_steps, finest)
    while steps(tbt, hw_tile) < want and tbt > 1:
        tbt = max(1, tbt // 2)                     # split the frame axis first
    while steps(tbt, hw_tile) < want and HW > lane and hw_tile > lane:
        hw_tile = max(lane, ((hw_tile // 2 + lane - 1) // lane) * lane)

    return tbt, hw_tile


def position_embedding_sine_3d(x, num_pos_feats=64, temperature=10000,
                               normalize=False, scale=None, dtype=jnp.float32):
    assert x.ndim == 5, f"{x.shape} should be a 5-dimensional tensor"
    if scale is not None and normalize is False:
        raise ValueError("normalize should be True if scale is passed")
    if scale is None:
        scale = 2 * math.pi

    B, T = int(x.shape[0]), int(x.shape[1])
    H, W = int(x.shape[3]), int(x.shape[4])
    N = int(num_pos_feats)
    C = 2 * N
    BT = B * T
    HW = H * W

    # ---- tiny host-side tables (all transcendentals live here) ----------------
    f32 = jnp.float32
    dim_t = jnp.asarray(temperature, f32) ** (2.0 * (jnp.arange(N) // 2).astype(f32) / N)
    dim_t_z = jnp.asarray(temperature, f32) ** (2.0 * (jnp.arange(C) // 2).astype(f32) / C)

    y = jnp.arange(1, H + 1, dtype=f32)    # y_embed (cumsum of ones along H)
    xg = jnp.arange(1, W + 1, dtype=f32)   # x_embed
    z = jnp.arange(1, T + 1, dtype=f32)    # z_embed
    if normalize:
        eps = 1e-6
        y = y / (H + eps) * scale
        xg = xg / (W + eps) * scale
        z = z / (T + eps) * scale

    y_tab = _sincos_table(y, dim_t)        # (H, N)
    x_tab = _sincos_table(xg, dim_t)       # (W, N)
    z_tab = _sincos_table(z, dim_t_z)      # (T, C)

    # Channel-major yx plane with H*W flattened onto the lane axis: (C, H*W).
    # Channels [0:N) = pos_y (depends on h), [N:2N) = pos_x (depends on w).
    plane_y = jnp.broadcast_to(y_tab.T[:, :, None], (N, H, W))
    plane_x = jnp.broadcast_to(x_tab.T[:, None, :], (N, H, W))
    plane = jnp.concatenate([plane_y, plane_x], axis=0).reshape(C, HW)

    # Per-frame temporal term with channel on the sublane axis: (B*T, C, 1).
    z_rows = jnp.tile(z_tab, (B, 1)).reshape(BT, C, 1)

    # ---- tiling / pallas call --------------------------------------------------
    out_itemsize = jnp.dtype(dtype).itemsize
    vmem_budget = _vmem_budget_bytes()
    target_block = max(2 << 20, min(8 << 20, vmem_budget // 8))
    tbt, hw_tile = _choose_tiles(BT, C, HW, out_itemsize, vmem_budget, target_block)
    grid = (pl.cdiv(HW, hw_tile), pl.cdiv(BT, tbt))  # frame axis innermost -> plane reused

    cost = pl.CostEstimate(
        flops=BT * C * HW,
        transcendentals=0,
        bytes_accessed=BT * C * HW * out_itemsize + C * HW * 4 + BT * C * 4,
    )

    out = pl.pallas_call(
        _add_kernel,
        out_shape=jax.ShapeDtypeStruct((BT, C, HW), dtype),
        grid=grid,
        in_specs=[
            pl.BlockSpec((C, hw_tile), lambda i, j: (0, i)),      # yx plane
            pl.BlockSpec((tbt, C, 1), lambda i, j: (j, 0, 0)),    # z rows
        ],
        out_specs=pl.BlockSpec((tbt, C, hw_tile), lambda i, j: (j, 0, i)),
        compiler_params=pltpu.CompilerParams(
            dimension_semantics=("parallel", "parallel"),
            vmem_limit_bytes=int(vmem_budget)),
        cost_estimate=cost,
    )(plane, z_rows)

    # (B*T, C, H*W) row-major is bit-identical to (B, T, C, H, W) row-major:
    # this reshape is layout-preserving (no transpose / extra HBM pass).
    return out.reshape(B, T, C, H, W)


def _reference(x, num_pos_feats=64, temperature=10000, normalize=False, scale=None):
    """Pure-JAX transcription of the PyTorch forward (mask=None path)."""
    if scale is None:
        scale = 2 * math.pi
    B, T, _, H, W = x.shape
    not_mask = jnp.ones((B, T, H, W), jnp.float32)
    z_embed = jnp.cumsum(not_mask, axis=1)
    y_embed = jnp.cumsum(not_mask, axis=2)
    x_embed = jnp.cumsum(not_mask, axis=3)
    if normalize:
        eps = 1e-6
        z_embed = z_embed / (z_embed[:, -1:, :, :] + eps) * scale
        y_embed = y_embed / (y_embed[:, :, -1:, :] + eps) * scale
        x_embed = x_embed / (x_embed[:, :, :, -1:] + eps) * scale
    N = num_pos_feats
    dim_t = jnp.asarray(temperature, jnp.float32) ** (
        2.0 * (jnp.arange(N) // 2).astype(jnp.float32) / N)
    dim_t_z = jnp.asarray(temperature, jnp.float32) ** (
        2.0 * (jnp.arange(2 * N) // 2).astype(jnp.float32) / (2 * N))
    pos_x = x_embed[..., None] / dim_t
    pos_y = y_embed[..., None] / dim_t
    pos_z = z_embed[..., None] / dim_t_z

    def interleave(p):
        s = jnp.sin(p[..., 0::2])
        c = jnp.cos(p[..., 1::2])
        return jnp.stack([s, c], axis=-1).reshape(p.shape)

    pos_x, pos_y, pos_z = interleave(pos_x), interleave(pos_y), interleave(pos_z)
    pos = jnp.concatenate([pos_y, pos_x], axis=-1) + pos_z
    return jnp.transpose(pos, (0, 1, 4, 2, 3))


if __name__ == "__main__":
    key = jax.random.PRNGKey(0)
    # x: (B, T, C_in, H, W) — only its shape matters to the module.
    x = jax.random.normal(key, (2, 3, 4, 8, 8), dtype=jnp.float32)

    # default config: normalize=False
    pos = position_embedding_sine_3d(x, num_pos_feats=64, normalize=False)
    pos = jax.block_until_ready(pos)
    ref = _reference(x, num_pos_feats=64, normalize=False)
    assert pos.shape == (2, 3, 128, 8, 8), pos.shape
    assert jnp.allclose(pos, ref, atol=1e-5, rtol=1e-5), "mismatch (normalize=False)"

    # normalized config (as used in Mask2Former-video)
    pos_n = position_embedding_sine_3d(x, num_pos_feats=64, normalize=True)
    pos_n = jax.block_until_ready(pos_n)
    ref_n = _reference(x, num_pos_feats=64, normalize=True)
    assert jnp.allclose(pos_n, ref_n, atol=1e-5, rtol=1e-5), "mismatch (normalize=True)"

    # Ragged H*W tiling path (HW = 240 > 128 and not a multiple of 128).
    x2 = jax.random.normal(key, (1, 3, 4, 12, 20), dtype=jnp.float32)
    pos2 = jax.block_until_ready(
        position_embedding_sine_3d(x2, num_pos_feats=64, normalize=True))
    ref2 = _reference(x2, num_pos_feats=64, normalize=True)
    assert pos2.shape == (1, 3, 128, 12, 20), pos2.shape
    assert jnp.allclose(pos2, ref2, atol=1e-5, rtol=1e-5), "mismatch (ragged HW)"

    # Optional bf16 output (halves HBM traffic on this store-bound kernel).
    pos_bf16 = jax.block_until_ready(
        position_embedding_sine_3d(x, num_pos_feats=64, normalize=True,
                                   dtype=jnp.bfloat16))
    assert pos_bf16.dtype == jnp.bfloat16
    assert jnp.allclose(pos_bf16.astype(jnp.float32), ref_n, atol=2e-2), "mismatch (bf16)"

    print("KERNEL_OK")
</pallas_src>

<mosaic_0001>
module attributes {stable_mosaic.version = 11 : i64} {
  func.func @_add_kernel(%arg0: i32, %arg1: i32, %arg2: memref<128x64xf32, #tpu.memory_space<vmem>>, %arg3: memref<1x128x1xf32, #tpu.memory_space<vmem>>, %arg4: memref<1x128x64xf32, #tpu.memory_space<vmem>>) attributes {dimension_semantics = [#tpu.dimension_semantics<parallel>, #tpu.dimension_semantics<parallel>], iteration_bounds = array<i64: 1, 6>, scalar_prefetch = 0 : i64, scratch_operands = 0 : i64, tpu.core_type = #tpu.core_type<tc>, window_params = [{transform_indices = @transform_0, window_bounds = array<i64: 128, 64>}, {transform_indices = @transform_1, window_bounds = array<i64: 1, 128, 1>}, {transform_indices = @transform_2, window_bounds = array<i64: 1, 128, 64>}]} {
    %c0 = arith.constant 0 : index
    %c0_0 = arith.constant 0 : index
    %c0_1 = arith.constant 0 : index
    %0 = vector.load %arg3[%c0, %c0_0, %c0_1] : memref<1x128x1xf32, #tpu.memory_space<vmem>>, vector<1x128x1xf32>
    %c0_2 = arith.constant 0 : index
    %c0_3 = arith.constant 0 : index
    %1 = vector.load %arg2[%c0_2, %c0_3] : memref<128x64xf32, #tpu.memory_space<vmem>>, vector<128x64xf32>
    %2 = vector.shape_cast %1 : vector<128x64xf32> to vector<1x128x64xf32>
    %3 = vector.broadcast %0 : vector<1x128x1xf32> to vector<1x128x64xf32>
    %4 = arith.addf %3, %2 : vector<1x128x64xf32>
    %c0_4 = arith.constant 0 : index
    %c0_5 = arith.constant 0 : index
    %c0_6 = arith.constant 0 : index
    %5 = vector.load %arg4[%c0_4, %c0_5, %c0_6] : memref<1x128x64xf32, #tpu.memory_space<vmem>>, vector<1x128x64xf32>
    tpu.vector_store %arg4[%c0_4, %c0_5, %c0_6], %4 {strides = array<i32>} : memref<1x128x64xf32, #tpu.memory_space<vmem>>, vector<1x128x64xf32>,
    return
  }
  func.func @transform_0(%arg0: i32, %arg1: i32) -> (i32, i32) {
    %c0_i32 = arith.constant 0 : i32
    %c0_i32_0 = arith.constant 0 : i32
    return %c0_i32, %arg0 : i32, i32
  }
  func.func @transform_1(%arg0: i32, %arg1: i32) -> (i32, i32, i32) {
    %c0_i32 = arith.constant 0 : i32
    %c0_i32_0 = arith.constant 0 : i32
    %c0_i32_1 = arith.constant 0 : i32
    return %arg1, %c0_i32, %c0_i32_0 : i32, i32, i32
  }
  func.func @transform_2(%arg0: i32, %arg1: i32) -> (i32, i32, i32) {
    %c0_i32 = arith.constant 0 : i32
    %c0_i32_0 = arith.constant 0 : i32
    return %arg1, %c0_i32, %arg0 : i32, i32, i32
  }
}

</mosaic_0001>

<llo_original>
// kernel: tpu_custom_call.1
$region0: #{tpu_custom_call.1}
  #allocation0 [shape = 'u32[]', space=smem, size = 0x4, offset = 0x4, fixed_abs, tag = 'smem constant byte address 0x4 - core index']
  #allocation1 [shape = 'u32[144,128]{1,0:T(1,128)}', space=vmem, size = 0x12000, scoped, tag = 'internal scratch']
  %s0 = inlined_call_operand.vmem [shape: f32[128,64], index: 0, kind: input, shape index: {}]
  %s1 = inlined_call_operand.vmem [shape: f32[6,128,1], index: 1, kind: input, shape index: {}]
  %s2 = inlined_call_operand.vmem [shape: f32[6,128,64], index: 2, kind: output, shape index: {}]
  %s3 = sld [smem:[#allocation0]]
  $region41: #{tpu_custom_call.1} parent=0
    _
  %s5 = ssub.s32 1, %s3
  %s6 = scalar_select 0, %s5, %s3
  loop: start=0, step=1, limit=8
  $region2: #{tpu_custom_call.1} parent=0 // loop_pre_header
    _
  $region3: #{tpu_custom_call.1} parent=0 // loop_header
    %s8 = sphi 0, %s12
    %p9 = scmp.ge.s32.totalorder %s8, 8
    %s15 = sphi 0, %s27
    %s16 = sphi 0, %s23
    %s17 = sphi 0, %s15
    %s18 = sphi 0, %s16
    %s19 = sphi 0, %s17
    %s20 = sphi 0, %s18
    %s30 = sphi 0, %s32
    %s33 = sphi 0, %s30
    %s34 = sphi 0, %s33
    %s50 = sphi 0, %s34
    %s56 = sphi 0, %s58
    %s59 = sphi 0, %s56
    %s60 = sphi 0, %s59
    %s76 = sphi 0, %s60
    %s84 = sphi 0, %s86
    %s87 = sphi 0, %s84
    %s88 = sphi 0, %s87
    %s104 = sphi 0, %s88
  $region4: #{tpu_custom_call.1} parent=0 // loop_header_branch
    %11 = sbr.rel (%p9) target = $region8
  $region5: #{tpu_custom_call.1} parent=0 // loop_body
    %s13 = ssub.s32 %s8, 1
    %s14 = ssub.s32 %s8, 2
    %s21 = sadd.s32 1, %s16
    %p22 = scmp.ge.s32.totalorder %s21, 6
    %s23 = scalar_select %p22, 0, %s21
    %s24 = sadd.s32 1, %s15
    %s25 = scalar_select %p22, %s24, %s15
    %p26 = scmp.ge.s32.totalorder %s25, 1
    %s27 = scalar_select %p26, 0, %s25
    %s28 = ssub.s32 %s15, %s27
    %p29 = scmp.eq.s32.totalorder %s28, 0
    %s31 = sadd.s32 %s30, 1
    %s32 = scalar_select %p29, %s30, %s31
    %p35 = pneg %p29
    %p36 = scmp.eq.s32.totalorder %s8, 5
    %p37 = por %p35, %p36
    %p38 = scmp.ne.s32.totalorder %s30, %s33
    %p39 = scmp.eq.s32.totalorder %s8, 0
    %p40 = por %p38, %p39
    %p41 = scmp.ne.s32.totalorder %s30, %s33
    %p42 = scmp.eq.s32.totalorder %s13, 5
    %p43 = por %p41, %p42
    %p44 = scmp.ne.s32.totalorder %s33, %s34
    %p45 = scmp.eq.s32.totalorder %s13, 0
    %p46 = por %p44, %p45
    %p47 = scmp.ne.s32.totalorder %s33, %s34
    %p48 = scmp.eq.s32.totalorder %s14, 5
    %p49 = por %p47, %p48
    %p51 = scmp.ne.s32.totalorder %s34, %s50
    %p52 = scmp.eq.s32.totalorder %s14, 0
    %p53 = por %p51, %p52
    %s54 = ssub.s32 %s16, %s23
    %p55 = scmp.eq.s32.totalorder %s54, 0
    %s57 = sadd.s32 %s56, 1
    %s58 = scalar_select %p55, %s56, %s57
    %p61 = pneg %p55
    %p62 = scmp.eq.s32.totalorder %s8, 5
    %p63 = por %p61, %p62
    %p64 = scmp.ne.s32.totalorder %s56, %s59
    %p65 = scmp.eq.s32.totalorder %s8, 0
    %p66 = por %p64, %p65
    %p67 = scmp.ne.s32.totalorder %s56, %s59
    %p68 = scmp.eq.s32.totalorder %s13, 5
    %p69 = por %p67, %p68
    %p70 = scmp.ne.s32.totalorder %s59, %s60
    %p71 = scmp.eq.s32.totalorder %s13, 0
    %p72 = por %p70, %p71
    %p73 = scmp.ne.s32.totalorder %s59, %s60
    %p74 = scmp.eq.s32.totalorder %s14, 5
    %p75 = por %p73, %p74
    %p77 = scmp.ne.s32.totalorder %s60, %s76
    %p78 = scmp.eq.s32.totalorder %s14, 0
    %p79 = por %p77, %p78
    %s80 = ssub.s32 %s16, %s23
    %s81 = ssub.s32 %s15, %s27
    %s82 = sor.u32 %s80, %s81
    %p83 = scmp.eq.s32.totalorder %s82, 0
    %s85 = sadd.s32 %s84, 1
    %s86 = scalar_select %p83, %s84, %s85
    %p89 = pneg %p83
    %p90 = scmp.eq.s32.totalorder %s8, 5
    %p91 = por %p89, %p90
    %p92 = scmp.ne.s32.totalorder %s84, %s87
    %p93 = scmp.eq.s32.totalorder %s8, 0
    %p94 = por %p92, %p93
    %p95 = scmp.ne.s32.totalorder %s84, %s87
    %p96 = scmp.eq.s32.totalorder %s13, 5
    %p97 = por %p95, %p96
    %p98 = scmp.ne.s32.totalorder %s87, %s88
    %p99 = scmp.eq.s32.totalorder %s13, 0
    %p100 = por %p98, %p99
    %p101 = scmp.ne.s32.totalorder %s87, %s88
    %p102 = scmp.eq.s32.totalorder %s14, 5
    %p103 = por %p101, %p102
    %p105 = scmp.ne.s32.totalorder %s88, %s104
    %p106 = scmp.eq.s32.totalorder %s14, 0
    %p107 = por %p105, %p106
    %p108 = scmp.le.s32.totalorder 1, %s8
    %p109 = scmp.lt.s32.totalorder %s8, 7
    %p110 = pnand %p108, %p109
    %p111 = pneg %p110
    // Predicated region
    $region9: #{tpu_custom_call.1} parent=5 // pred_check
      _
    $region10: #{tpu_custom_call.1} parent=5 // pred_check_branch
      %113 = sbr.rel (%p110) target = $region12
    $region11: #{tpu_custom_call.1} parent=5 // pred_region
      %s114 = ssub.s32 %s8, 1
      // Predicated region
      $region13: #{tpu_custom_call.1} parent=11 // pred_check
        %p115 = pneg %p46
      $region14: #{tpu_custom_call.1} parent=11 // pred_check_branch
        %117 = sbr.rel (%p115) target = $region16
      $region15: #{tpu_custom_call.1} parent=11 // pred_region
        %p118 = scmp.lt.s32.totalorder %s17, 0
        %s119 = scalar_select %p118, %s17, 0
        %s120 = smul.addr %s119, 8
        %s121 = scalar_lea.vmem %s0, %s120
      $region16: #{tpu_custom_call.1} parent=11 // pred_fallthru
        _
    $region12: #{tpu_custom_call.1} parent=5 // pred_fallthru
      _
    %p122 = scmp.lt.s32.totalorder %s8, 6
    // Predicated region
    $region17: #{tpu_custom_call.1} parent=5 // pred_check
      %p123 = pneg %p122
    $region18: #{tpu_custom_call.1} parent=5 // pred_check_branch
      %125 = sbr.rel (%p123) target = $region20
    $region19: #{tpu_custom_call.1} parent=5 // pred_region
      // Predicated region
      $region21: #{tpu_custom_call.1} parent=19 // pred_check
        %p126 = pneg %p66
      $region22: #{tpu_custom_call.1} parent=19 // pred_check_branch
        %128 = sbr.rel (%p126) target = $region24
      $region23: #{tpu_custom_call.1} parent=19 // pred_region
        %p129 = scmp.lt.s32.totalorder %s16, 5
        %s130 = scalar_select %p129, %s16, 5
        %s131 = smul.addr %s130, 16
        %s132 = smul.addr %s131, 8
        %s133 = scalar_lea.vmem %s1, %s132
      $region24: #{tpu_custom_call.1} parent=19 // pred_fallthru
        _
    $region20: #{tpu_custom_call.1} parent=5 // pred_fallthru
      _
    %p134 = scmp.le.s32.totalorder 1, %s8
    %p135 = scmp.lt.s32.totalorder %s8, 7
    %p136 = pnand %p134, %p135
    %p137 = pneg %p136
    // Predicated region
    $region25: #{tpu_custom_call.1} parent=5 // pred_check
      _
    $region26: #{tpu_custom_call.1} parent=5 // pred_check_branch
      %139 = sbr.rel (%p136) target = $region28
    $region27: #{tpu_custom_call.1} parent=5 // pred_region
      %s140 = ssub.s32 %s8, 1
      %p141 = scmp.lt.s32.totalorder %s17, 0
      %s142 = scalar_select %p141, %s17, 0
      %s143 = smul.addr %s142, 8
      %s144 = scalar_lea.vmem %s0, %s143
      %p145 = pneg %p46
      %p146 = pneg %p43
      %p147 = scmp.lt.s32.totalorder %s18, 5
      %s148 = scalar_select %p147, %s18, 5
      %s149 = smul.addr %s148, 16
      %s150 = smul.addr %s149, 8
      %s151 = scalar_lea.vmem %s1, %s150
      %p152 = pneg %p72
      %p153 = pneg %p69
      %p154 = pneg %p100
      %p155 = pneg %p97
      %p156 = scmp.lt.s32.totalorder %s18, 5
      %s157 = scalar_select %p156, %s18, 5
      %p158 = scmp.lt.s32.totalorder %s17, 0
      %s159 = scalar_select %p158, %s17, 0
      %s160 = smul.addr %s157, 16
      %s161 = sadd.s32 %s159, %s160
      %s162 = smul.addr %s161, 8
      %s163 = scalar_lea.vmem %s2, %s162
      %p164 = scmp.lt.s32.totalorder %s17, 0
      %s165 = scalar_select %p164, %s17, 0
      %s166 = smul.addr %s165, 8
      %s167 = scalar_lea.vmem %s0, %s166
      %p168 = scmp.lt.s32.totalorder %s18, 5
      %s169 = scalar_select %p168, %s18, 5
      %s170 = smul.addr %s169, 16
      %s171 = smul.addr %s170, 8
      %s172 = scalar_lea.vmem %s1, %s171
      %p173 = scmp.lt.s32.totalorder %s18, 5
      %s174 = scalar_select %p173, %s18, 5
      %p175 = scmp.lt.s32.totalorder %s17, 0
      %s176 = scalar_select %p175, %s17, 0
      %s177 = smul.addr %s174, 16
      %s178 = sadd.s32 %s176, %s177
      %s179 = smul.addr %s178, 8
      %s180 = scalar_lea.vmem %s2, %s179
      %v181 = vld [vmem:[%s172] sm:$0xff]
      %v182 = vld [vmem:[%s172 + $0x8] sm:$0xff]
      %v183 = vld [vmem:[%s172 + $0x10] sm:$0xff]
      %v184 = vld [vmem:[%s172 + $0x18] sm:$0xff]
      %v185 = vld [vmem:[%s172 + $0x20] sm:$0xff]
      %v186 = vld [vmem:[%s172 + $0x28] sm:$0xff]
      %v187 = vld [vmem:[%s172 + $0x30] sm:$0xff]
      %v188 = vld [vmem:[%s172 + $0x38] sm:$0xff]
      %v189 = vld [vmem:[%s172 + $0x40] sm:$0xff]
      %v190 = vld [vmem:[%s172 + $0x48] sm:$0xff]
      %v191 = vld [vmem:[%s172 + $0x50] sm:$0xff]
      %v192 = vld [vmem:[%s172 + $0x58] sm:$0xff]
      %v193 = vld [vmem:[%s172 + $0x60] sm:$0xff]
      %v194 = vld [vmem:[%s172 + $0x68] sm:$0xff]
      %v195 = vld [vmem:[%s172 + $0x70] sm:$0xff]
      %v196 = vld [vmem:[%s172 + $0x78] sm:$0xff]
      %v197 = vld [vmem:[%s167] sm:$0xff]
      %v198 = vld [vmem:[%s167 + $0x8] sm:$0xff]
      %v199 = vld [vmem:[%s167 + $0x10] sm:$0xff]
      %v200 = vld [vmem:[%s167 + $0x18] sm:$0xff]
      %v201 = vld [vmem:[%s167 + $0x20] sm:$0xff]
      %v202 = vld [vmem:[%s167 + $0x28] sm:$0xff]
      %v203 = vld [vmem:[%s167 + $0x30] sm:$0xff]
      %v204 = vld [vmem:[%s167 + $0x38] sm:$0xff]
      %v205 = vld [vmem:[%s167 + $0x40] sm:$0xff]
      %v206 = vld [vmem:[%s167 + $0x48] sm:$0xff]
      %v207 = vld [vmem:[%s167 + $0x50] sm:$0xff]
      %v208 = vld [vmem:[%s167 + $0x58] sm:$0xff]
      %v209 = vld [vmem:[%s167 + $0x60] sm:$0xff]
      %v210 = vld [vmem:[%s167 + $0x68] sm:$0xff]
      %v211 = vld [vmem:[%s167 + $0x70] sm:$0xff]
      %v212 = vld [vmem:[%s167 + $0x78] sm:$0xff]
      %214 = vset.pattern.permute.xlu0 0
      %215 = vperm.xlu0 %214, %v181
      %v216 = vpop.permute.xlu0 %215
      %219 = vset.pattern.permute.xlu0 0
      %220 = vperm.xlu0 %219, %v182
      %v221 = vpop.permute.xlu0 %220
      %224 = vset.pattern.permute.xlu0 0
      %225 = vperm.xlu0 %224, %v183
      %v226 = vpop.permute.xlu0 %225
      %229 = vset.pattern.permute.xlu0 0
      %230 = vperm.xlu0 %229, %v184
      %v231 = vpop.permute.xlu0 %230
      %234 = vset.pattern.permute.xlu0 0
      %235 = vperm.xlu0 %234, %v185
      %v236 = vpop.permute.xlu0 %235
      %239 = vset.pattern.permute.xlu0 0
      %240 = vperm.xlu0 %239, %v186
      %v241 = vpop.permute.xlu0 %240
      %244 = vset.pattern.permute.xlu0 0
      %245 = vperm.xlu0 %244, %v187
      %v246 = vpop.permute.xlu0 %245
      %249 = vset.pattern.permute.xlu0 0
      %250 = vperm.xlu0 %249, %v188
      %v251 = vpop.permute.xlu0 %250
      %254 = vset.pattern.permute.xlu0 0
      %255 = vperm.xlu0 %254, %v189
      %v256 = vpop.permute.xlu0 %255
      %259 = vset.pattern.permute.xlu0 0
      %260 = vperm.xlu0 %259, %v190
      %v261 = vpop.permute.xlu0 %260
      %264 = vset.pattern.permute.xlu0 0
      %265 = vperm.xlu0 %264, %v191
      %v266 = vpop.permute.xlu0 %265
      %269 = vset.pattern.permute.xlu0 0
      %270 = vperm.xlu0 %269, %v192
      %v271 = vpop.permute.xlu0 %270
      %274 = vset.pattern.permute.xlu0 0
      %275 = vperm.xlu0 %274, %v193
      %v276 = vpop.permute.xlu0 %275
      %279 = vset.pattern.permute.xlu0 0
      %280 = vperm.xlu0 %279, %v194
      %v281 = vpop.permute.xlu0 %280
      %284 = vset.pattern.permute.xlu0 0
      %285 = vperm.xlu0 %284, %v195
      %v286 = vpop.permute.xlu0 %285
      %289 = vset.pattern.permute.xlu0 0
      %290 = vperm.xlu0 %289, %v196
      %v291 = vpop.permute.xlu0 %290
      %v293 = vadd.f32 %v216, %v197
      %v294 = vadd.f32 %v221, %v198
      %v295 = vadd.f32 %v226, %v199
      %v296 = vadd.f32 %v231, %v200
      %v297 = vadd.f32 %v236, %v201
      %v298 = vadd.f32 %v241, %v202
      %v299 = vadd.f32 %v246, %v203
      %v300 = vadd.f32 %v251, %v204
      %v301 = vadd.f32 %v256, %v205
      %v302 = vadd.f32 %v261, %v206
      %v303 = vadd.f32 %v266, %v207
      %v304 = vadd.f32 %v271, %v208
      %v305 = vadd.f32 %v276, %v209
      %v306 = vadd.f32 %v281, %v210
      %v307 = vadd.f32 %v286, %v211
      %v308 = vadd.f32 %v291, %v212
      %vm309 = vcmask 523264
      %310 = vst.msk [vmem:[%s180] sm:$0xff] %vm309, %v293
      %311 = vst.msk [vmem:[%s180 + $0x8] sm:$0xff] %vm309, %v294
      %312 = vst.msk [vmem:[%s180 + $0x10] sm:$0xff] %vm309, %v295
      %313 = vst.msk [vmem:[%s180 + $0x18] sm:$0xff] %vm309, %v296
      %314 = vst.msk [vmem:[%s180 + $0x20] sm:$0xff] %vm309, %v297
      %315 = vst.msk [vmem:[%s180 + $0x28] sm:$0xff] %vm309, %v298
      %316 = vst.msk [vmem:[%s180 + $0x30] sm:$0xff] %vm309, %v299
      %317 = vst.msk [vmem:[%s180 + $0x38] sm:$0xff] %vm309, %v300
      %318 = vst.msk [vmem:[%s180 + $0x40] sm:$0xff] %vm309, %v301
      %319 = vst.msk [vmem:[%s180 + $0x48] sm:$0xff] %vm309, %v302
      %320 = vst.msk [vmem:[%s180 + $0x50] sm:$0xff] %vm309, %v303
      %321 = vst.msk [vmem:[%s180 + $0x58] sm:$0xff] %vm309, %v304
      %322 = vst.msk [vmem:[%s180 + $0x60] sm:$0xff] %vm309, %v305
      %323 = vst.msk [vmem:[%s180 + $0x68] sm:$0xff] %vm309, %v306
      %324 = vst.msk [vmem:[%s180 + $0x70] sm:$0xff] %vm309, %v307
      %325 = vst.msk [vmem:[%s180 + $0x78] sm:$0xff] %vm309, %v308
      %p326 = scmp.lt.s32.totalorder %s18, 5
      %s327 = scalar_select %p326, %s18, 5
      %p328 = scmp.lt.s32.totalorder %s17, 0
      %s329 = scalar_select %p328, %s17, 0
      %s330 = smul.addr %s327, 16
      %s331 = sadd.s32 %s329, %s330
      %s332 = smul.addr %s331, 8
      %s333 = scalar_lea.vmem %s2, %s332
      // Predicated region
      $region29: #{tpu_custom_call.1} parent=27 // pred_check
        %p334 = pneg %p97
      $region30: #{tpu_custom_call.1} parent=27 // pred_check_branch
        %336 = sbr.rel (%p334) target = $region32
      $region31: #{tpu_custom_call.1} parent=27 // pred_region
        _
      $region32: #{tpu_custom_call.1} parent=27 // pred_fallthru
        _
    $region28: #{tpu_custom_call.1} parent=5 // pred_fallthru
      _
    %p337 = scmp.le.s32.totalorder 2, %s8
    // Predicated region
    $region33: #{tpu_custom_call.1} parent=5 // pred_check
      %p338 = pneg %p337
    $region34: #{tpu_custom_call.1} parent=5 // pred_check_branch
      %340 = sbr.rel (%p338) target = $region36
    $region35: #{tpu_custom_call.1} parent=5 // pred_region
      %s341 = ssub.s32 %s8, 2
      // Predicated region
      $region37: #{tpu_custom_call.1} parent=35 // pred_check
        %p342 = pneg %p103
      $region38: #{tpu_custom_call.1} parent=35 // pred_check_branch
        %344 = sbr.rel (%p342) target = $region40
      $region39: #{tpu_custom_call.1} parent=35 // pred_region
        %p345 = scmp.lt.s32.totalorder %s20, 5
        %s346 = scalar_select %p345, %s20, 5
        %p347 = scmp.lt.s32.totalorder %s19, 0
        %s348 = scalar_select %p347, %s19, 0
        %s349 = smul.addr %s346, 16
        %s350 = sadd.s32 %s348, %s349
        %s351 = smul.addr %s350, 8
        %s352 = scalar_lea.vmem %s2, %s351
      $region40: #{tpu_custom_call.1} parent=35 // pred_fallthru
        _
    $region36: #{tpu_custom_call.1} parent=5 // pred_fallthru
      _
  $region6: #{tpu_custom_call.1} parent=0 // loop_footer
    %s12 = sadd.s32 1, %s8
  $region7: #{tpu_custom_call.1} parent=0 // loop_footer_branch
    %7 = sbr.rel target = $region3
  $region8: #{tpu_custom_call.1} parent=0 // loop_exit
    _

</llo_original>
